<compile_context>
chip_gen: v5e
topology: v5e:2x2
jax: 0.10.0
libtpu: 0.0.40
codegen_flags: <defaults>
</compile_context>

<pallas_src>
import functools
import math

import jax
import jax.numpy as jnp
from jax.experimental import pallas as pl
from jax.experimental.pallas import tpu as pltpu


def _funnel_attn_kernel(*refs, bb, num_heads, head_dim, pool, new_s, seq_k,
                        hidden, has_qs, has_mask):
    """One grid step == `bb` batch elements. Everything lives in VMEM."""
    idx = 0
    if has_qs:
        qs_ref = refs[idx]; idx += 1
    hs_ref = refs[idx]; idx += 1
    if has_mask:
        mask_ref = refs[idx]; idx += 1
    wq_ref, bq_ref, wkv_ref, bkv_ref, wd_ref, bd_ref, o_ref = refs[idx:idx + 7]

    f32 = jnp.float32
    bf16 = jnp.bfloat16

    hs = hs_ref[...]                                    # [bb, seq_k, H] (bf16)
    hs2 = hs.reshape(bb * seq_k, hidden)                # batch folded into M

    # ---- funnel query states ----
    if has_qs:                                          # length_factor > 1 (or fallback)
        qs2 = qs_ref[...].reshape(bb * new_s, hidden)
    elif pool > 1:                                      # strided mean pooling, in-kernel
        qs2 = jnp.mean(hs.astype(f32).reshape(bb, pool, new_s, hidden), axis=1)
        qs2 = qs2.reshape(bb * new_s, hidden).astype(bf16)
    else:                                               # length_factor == 1
        qs2 = hs2

    # ---- projections: bf16 MXU operands, f32 accumulation ----
    q = jnp.dot(qs2, wq_ref[...], preferred_element_type=f32) + bq_ref[...]   # [bb*sq, H]
    kv = jnp.dot(hs2, wkv_ref[...], preferred_element_type=f32) + bkv_ref[...]  # [bb*sk, 2H]
    k_all = kv[:, :hidden]                              # 128-lane-aligned K slab
    v_all = kv[:, hidden:]                              # 128-lane-aligned V slab

    scale = 1.0 / math.sqrt(head_dim)
    hn = head_dim
    wd = wd_ref[...]                                    # [nh, hn, H] bf16 (sublane-aligned rows)

    for i in range(bb):                                 # static unroll over batch elems in block
        q_i = q[i * new_s:(i + 1) * new_s, :]
        k_i = k_all[i * seq_k:(i + 1) * seq_k, :]
        v_i = v_all[i * seq_k:(i + 1) * seq_k, :]

        # heads-batched [nh, seq, hn] operands for one batched dot_general per stage
        qh = jnp.stack([q_i[:, h * hn:(h + 1) * hn] for h in range(num_heads)], axis=0)
        kh = jnp.stack([k_i[:, h * hn:(h + 1) * hn] for h in range(num_heads)], axis=0)
        vh = jnp.stack([v_i[:, h * hn:(h + 1) * hn] for h in range(num_heads)], axis=0)

        s = jnp.einsum("nqd,nkd->nqk", qh.astype(bf16), kh.astype(bf16),
                       preferred_element_type=f32) * scale          # [nh, sq, sk] f32
        if has_mask:
            s = s + mask_ref[i][None, :, :]                          # additive mask over keys
        s = s - jnp.max(s, axis=-1, keepdims=True)
        p = jnp.exp(s)
        p = p * pl.reciprocal(jnp.sum(p, axis=-1, keepdims=True), approx=True)

        ctx = jnp.einsum("nqk,nkd->nqd", p.astype(bf16), vh.astype(bf16),
                         preferred_element_type=f32)                 # [nh, sq, hn]
        # dense output projection as per-head accumulation (no lane-dim concat)
        outh = jnp.einsum("nqd,ndh->nqh", ctx.astype(bf16), wd,
                          preferred_element_type=f32)                # [nh, sq, H]
        out_i = jnp.sum(outh, axis=0) + bd_ref[...]                  # [sq, H]
        o_ref[i] = out_i.astype(o_ref.dtype)


def _pick_batch_block(batch, new_s, seq_k):
    """Largest divisor of `batch` folded into the matmul M dim while keeping
    >= 2 grid steps (v7x megacore) and bounded per-step VMEM blocks."""
    bb = 1
    for d in range(1, batch + 1):
        if batch % d != 0:
            continue
        if batch >= 2 and batch // d < 2:
            continue
        if d * new_s > 256 or d * seq_k > 1024:
            continue
        bb = d
    return bb


def funnel_attention_component(hidden_states_SBH, attention_mask, params, *,
                               num_heads, length_factor):
    """hidden_states_SBH: [S, B, H] (module LAYOUT '[S B H]').
    attention_mask: additive mask [B, S] (or [B,1,1,S]) or None.  Returns [new_S, B, H]."""
    S, B, H = hidden_states_SBH.shape
    assert H % num_heads == 0
    head_dim = H // num_heads

    new_S = int(round(S * length_factor))
    assert abs(S * length_factor - new_S) < 1e-6, "S * length_factor must be an integer"

    bf16 = jnp.bfloat16

    # ---- funnel query construction (pooled in-kernel when shapes are clean) ----
    pool = 1
    qs_BSH = None
    if length_factor < 1:
        pool = int(round(1.0 / length_factor))
        assert pool * new_S == S
        if new_S % 8 != 0:
            # awkward sublane shapes: pool in XLA and hand pooled queries to the kernel
            q_states = hidden_states_SBH.reshape(pool, new_S, B, H).mean(axis=0)
            qs_BSH = jnp.transpose(q_states, (1, 0, 2)).astype(bf16)
            pool = 1
    elif length_factor > 1:
        # matches torch.repeat_interleave(hidden_states, factor, dim=0)
        q_states = jnp.repeat(hidden_states_SBH, int(round(length_factor)), axis=0)
        qs_BSH = jnp.transpose(q_states, (1, 0, 2)).astype(bf16)

    has_qs = qs_BSH is not None
    has_mask = attention_mask is not None

    # Batch-first, bf16 activations for the MXU (cast fuses with the transpose in XLA).
    # TODO(synk): the [S,B,H]<->[B,S,H] boundary transposes are still XLA-side HBM passes;
    # folding them into the kernel (strided/squeezed BlockSpecs) is a further possible win.
    hs_BSH = jnp.transpose(hidden_states_SBH, (1, 0, 2)).astype(bf16)

    # ---- one-time weight prep ----
    # PyTorch Linear: y = x @ W^T + b.  Permute Wkv columns from head-interleaved
    # [k0 v0 k1 v1 ...] to slab layout [K | V] so the kernel's k/v slices are lane-aligned.
    k_cols = (jnp.arange(num_heads)[:, None] * (2 * head_dim)
              + jnp.arange(head_dim)[None, :]).reshape(-1)
    perm = jnp.concatenate([k_cols, k_cols + head_dim])                 # [2H]

    wq_t = params["wq"].T.astype(bf16)                                  # [H, H]
    bq = params["bq"].reshape(1, H).astype(jnp.float32)
    wkv_t = params["wkv"].T[:, perm].astype(bf16)                       # [H, 2H]  K|V slabs
    bkv = params["bkv"][perm].reshape(1, 2 * H).astype(jnp.float32)
    wd_heads = params["wd"].T.reshape(num_heads, head_dim, H).astype(bf16)  # [nh, hn, H]
    bd = params["bd"].reshape(1, H).astype(jnp.float32)

    bb = _pick_batch_block(B, new_S, S)
    grid = (B // bb,)

    in_specs = []
    inputs = []
    if has_qs:
        in_specs.append(pl.BlockSpec((bb, new_S, H), lambda b: (b, 0, 0)))
        inputs.append(qs_BSH)
    in_specs.append(pl.BlockSpec((bb, S, H), lambda b: (b, 0, 0)))
    inputs.append(hs_BSH)
    if has_mask:
        mask_B1S = attention_mask.reshape(B, 1, S).astype(jnp.float32)
        in_specs.append(pl.BlockSpec((bb, 1, S), lambda b: (b, 0, 0)))
        inputs.append(mask_B1S)
    in_specs += [
        pl.BlockSpec((H, H), lambda b: (0, 0)),                          # Wq^T (bf16)
        pl.BlockSpec((1, H), lambda b: (0, 0)),                          # bq
        pl.BlockSpec((H, 2 * H), lambda b: (0, 0)),                      # Wkv^T permuted (bf16)
        pl.BlockSpec((1, 2 * H), lambda b: (0, 0)),                      # bkv permuted
        pl.BlockSpec((num_heads, head_dim, H), lambda b: (0, 0, 0)),     # Wdense^T per head (bf16)
        pl.BlockSpec((1, H), lambda b: (0, 0)),                          # bdense
    ]
    inputs += [wq_t, bq, wkv_t, bkv, wd_heads, bd]

    kernel = functools.partial(
        _funnel_attn_kernel, bb=bb, num_heads=num_heads, head_dim=head_dim,
        pool=pool, new_s=new_S, seq_k=S, hidden=H, has_qs=has_qs, has_mask=has_mask)

    out_BSH = pl.pallas_call(
        kernel,
        out_shape=jax.ShapeDtypeStruct((B, new_S, H), hidden_states_SBH.dtype),
        grid_spec=pltpu.PrefetchScalarGridSpec(
            num_scalar_prefetch=0,
            grid=grid,
            in_specs=in_specs,
            out_specs=pl.BlockSpec((bb, new_S, H), lambda b: (b, 0, 0)),
        ),
        compiler_params=pltpu.CompilerParams(
            dimension_semantics=("parallel",),
            vmem_limit_bytes=32 * 1024 * 1024,
        ),
    )(*inputs)

    # TODO(synk): attention dropout / torch.jit.script fusion are training/compile-time only
    # (eval-mode no-ops); rotary embeddings are off in the default funnel config.
    # TODO(synk): for production S, tile the key/value sequence with an online-softmax
    # (flash-style) grid axis so VMEM stays bounded on v7x (64 MiB).
    return jnp.transpose(out_BSH, (1, 0, 2))            # back to [new_S, B, H]


def reference(hidden_states_SBH, attention_mask, params, *, num_heads, length_factor):
    """Pure-JAX f32 reference mirroring the PyTorch module (eval mode, no rotary)."""
    S, B, H = hidden_states_SBH.shape
    hn = H // num_heads
    new_S = int(round(S * length_factor))
    if length_factor < 1:
        pool = int(round(1.0 / length_factor))
        query_states = hidden_states_SBH.reshape(pool, new_S, B, H).mean(axis=0)
    elif length_factor > 1:
        query_states = jnp.repeat(hidden_states_SBH, int(round(length_factor)), axis=0)
    else:
        query_states = hidden_states_SBH
    q = query_states @ params["wq"].T + params["bq"]             # [new_S, B, H]
    kv = hidden_states_SBH @ params["wkv"].T + params["bkv"]     # [S, B, 2H]
    q = q.reshape(new_S, B, num_heads, hn)
    kv = kv.reshape(S, B, num_heads, 2 * hn)
    k, v = kv[..., :hn], kv[..., hn:]
    scores = jnp.einsum("qbnd,kbnd->bnqk", q, k) / jnp.sqrt(jnp.float32(hn))
    if attention_mask is not None:
        scores = scores + attention_mask.reshape(B, 1, 1, S)
    probs = jax.nn.softmax(scores, axis=-1)
    ctx = jnp.einsum("bnqk,kbnd->qbnd", probs, v).reshape(new_S, B, H)
    return ctx @ params["wd"].T + params["bd"]


if __name__ == "__main__":
    key = jax.random.PRNGKey(0)
    S, B, H = 16, 2, 128          # seq, batch, hidden
    num_heads = 4                 # head_dim = 32
    length_factor = 0.5           # funnel: query sequence pooled to new_S = 8

    ks = jax.random.split(key, 7)
    hidden_states = jax.random.normal(ks[0], (S, B, H), jnp.float32)
    params = {
        "wq":  jax.random.normal(ks[1], (H, H), jnp.float32) * 0.02,
        "bq":  jax.random.normal(ks[2], (H,), jnp.float32) * 0.02,
        "wkv": jax.random.normal(ks[3], (2 * H, H), jnp.float32) * 0.02,
        "bkv": jax.random.normal(ks[4], (2 * H,), jnp.float32) * 0.02,
        "wd":  jax.random.normal(ks[5], (H, H), jnp.float32) * 0.02,
        "bd":  jax.random.normal(ks[6], (H,), jnp.float32) * 0.02,
    }
    # BERT-style additive mask [B, S]: batch 1 has its last 4 tokens masked out.
    valid_lens = jnp.array([[S], [S - 4]], jnp.int32)
    attention_mask = jnp.where(jnp.arange(S)[None, :] < valid_lens,
                               0.0, -10000.0).astype(jnp.float32)

    out = funnel_attention_component(hidden_states, attention_mask, params,
                                     num_heads=num_heads, length_factor=length_factor)
    out = jax.block_until_ready(out)
    ref = reference(hidden_states, attention_mask, params,
                    num_heads=num_heads, length_factor=length_factor)
    assert out.shape == (int(S * length_factor), B, H), out.shape
    # bf16 MXU operands (f32 accumulation) vs f32 reference -> relaxed tolerance
    assert jnp.allclose(out, ref, atol=2e-2, rtol=2e-2), float(jnp.max(jnp.abs(out - ref)))

    # no-mask path: the mask add is statically compiled out of the kernel
    out2 = jax.block_until_ready(
        funnel_attention_component(hidden_states, None, params,
                                   num_heads=num_heads, length_factor=length_factor))
    ref2 = reference(hidden_states, None, params,
                     num_heads=num_heads, length_factor=length_factor)
    assert jnp.allclose(out2, ref2, atol=2e-2, rtol=2e-2), float(jnp.max(jnp.abs(out2 - ref2)))

    print("KERNEL_OK")
</pallas_src>

<mosaic_0001>
module attributes {stable_mosaic.version = 11 : i64} {
  func.func @_funnel_attn_kernel(%arg0: i32, %arg1: memref<1x16x128xbf16, #tpu.memory_space<vmem>>, %arg2: memref<1x1x16xf32, #tpu.memory_space<vmem>>, %arg3: memref<128x128xbf16, #tpu.memory_space<vmem>>, %arg4: memref<1x128xf32, #tpu.memory_space<vmem>>, %arg5: memref<128x256xbf16, #tpu.memory_space<vmem>>, %arg6: memref<1x256xf32, #tpu.memory_space<vmem>>, %arg7: memref<4x32x128xbf16, #tpu.memory_space<vmem>>, %arg8: memref<1x128xf32, #tpu.memory_space<vmem>>, %arg9: memref<1x8x128xf32, #tpu.memory_space<vmem>>) attributes {dimension_semantics = [#tpu.dimension_semantics<parallel>], iteration_bounds = array<i64: 2>, scalar_prefetch = 0 : i64, scratch_operands = 0 : i64, tpu.core_type = #tpu.core_type<tc>, window_params = [{transform_indices = @transform_0, window_bounds = array<i64: 1, 16, 128>}, {transform_indices = @transform_1, window_bounds = array<i64: 1, 1, 16>}, {pipeline_mode = #tpu.pipeline_mode<synchronous>, transform_indices = @transform_2, window_bounds = array<i64: 128, 128>}, {pipeline_mode = #tpu.pipeline_mode<synchronous>, transform_indices = @transform_3, window_bounds = array<i64: 1, 128>}, {pipeline_mode = #tpu.pipeline_mode<synchronous>, transform_indices = @transform_4, window_bounds = array<i64: 128, 256>}, {pipeline_mode = #tpu.pipeline_mode<synchronous>, transform_indices = @transform_5, window_bounds = array<i64: 1, 256>}, {pipeline_mode = #tpu.pipeline_mode<synchronous>, transform_indices = @transform_6, window_bounds = array<i64: 4, 32, 128>}, {pipeline_mode = #tpu.pipeline_mode<synchronous>, transform_indices = @transform_7, window_bounds = array<i64: 1, 128>}, {transform_indices = @transform_8, window_bounds = array<i64: 1, 8, 128>}]} {
    %c0 = arith.constant 0 : index
    %c0_0 = arith.constant 0 : index
    %c0_1 = arith.constant 0 : index
    %0 = vector.load %arg1[%c0, %c0_0, %c0_1] : memref<1x16x128xbf16, #tpu.memory_space<vmem>>, vector<1x16x128xbf16>
    %1 = vector.shape_cast %0 : vector<1x16x128xbf16> to vector<16x128xbf16>
    %2 = arith.extf %0 : vector<1x16x128xbf16> to vector<1x16x128xf32>
    %3 = vector.shape_cast %2 : vector<1x16x128xf32> to vector<1x2x8x128xf32>
    %cst = arith.constant dense<0.000000e+00> : vector<1x8x128xf32>
    %4 = vector.multi_reduction <add>, %3, %cst [1] : vector<1x2x8x128xf32> to vector<1x8x128xf32>
    %cst_2 = arith.constant 2.000000e+00 : f32
    %5 = vector.broadcast %cst_2 : f32 to vector<1x8x128xf32>
    %6 = arith.divf %4, %5 : vector<1x8x128xf32>
    %7 = vector.shape_cast %6 : vector<1x8x128xf32> to vector<8x128xf32>
    %8 = arith.truncf %7 : vector<8x128xf32> to vector<8x128xbf16>
    %c0_3 = arith.constant 0 : index
    %c0_4 = arith.constant 0 : index
    %9 = vector.load %arg3[%c0_3, %c0_4] : memref<128x128xbf16, #tpu.memory_space<vmem>>, vector<128x128xbf16>
    %cst_5 = arith.constant dense<0.000000e+00> : vector<8x128xf32>
    %10 = tpu.matmul %8, %9, %cst_5 {dimension_numbers = #tpu.dot_dimension_numbers<[1], [0], [0], [1], [0, 0, 1, 1], [], []>} : vector<8x128xbf16>, vector<128x128xbf16>, vector<8x128xf32> -> vector<8x128xf32>
    %c0_6 = arith.constant 0 : index
    %c0_7 = arith.constant 0 : index
    %11 = vector.load %arg4[%c0_6, %c0_7] : memref<1x128xf32, #tpu.memory_space<vmem>>, vector<1x128xf32>
    %12 = vector.broadcast %11 : vector<1x128xf32> to vector<8x128xf32>
    %13 = arith.addf %10, %12 : vector<8x128xf32>
    %c0_8 = arith.constant 0 : index
    %c0_9 = arith.constant 0 : index
    %14 = vector.load %arg5[%c0_8, %c0_9] : memref<128x256xbf16, #tpu.memory_space<vmem>>, vector<128x256xbf16>
    %cst_10 = arith.constant dense<0.000000e+00> : vector<16x256xf32>
    %15 = tpu.matmul %1, %14, %cst_10 {dimension_numbers = #tpu.dot_dimension_numbers<[1], [0], [0], [1], [0, 0, 1, 1], [], []>} : vector<16x128xbf16>, vector<128x256xbf16>, vector<16x256xf32> -> vector<16x256xf32>
    %c0_11 = arith.constant 0 : index
    %c0_12 = arith.constant 0 : index
    %16 = vector.load %arg6[%c0_11, %c0_12] : memref<1x256xf32, #tpu.memory_space<vmem>>, vector<1x256xf32>
    %17 = vector.broadcast %16 : vector<1x256xf32> to vector<16x256xf32>
    %18 = arith.addf %15, %17 : vector<16x256xf32>
    %19 = vector.extract_strided_slice %18 {offsets = [0, 0], sizes = [16, 128], strides = [1, 1]} : vector<16x256xf32> to vector<16x128xf32>
    %20 = vector.extract_strided_slice %18 {offsets = [0, 128], sizes = [16, 128], strides = [1, 1]} : vector<16x256xf32> to vector<16x128xf32>
    %c0_13 = arith.constant 0 : index
    %c0_14 = arith.constant 0 : index
    %c0_15 = arith.constant 0 : index
    %21 = vector.load %arg7[%c0_13, %c0_14, %c0_15] : memref<4x32x128xbf16, #tpu.memory_space<vmem>>, vector<4x32x128xbf16>
    %22 = vector.extract_strided_slice %13 {offsets = [0, 0], sizes = [8, 32], strides = [1, 1]} : vector<8x128xf32> to vector<8x32xf32>
    %23 = vector.extract_strided_slice %13 {offsets = [0, 32], sizes = [8, 32], strides = [1, 1]} : vector<8x128xf32> to vector<8x32xf32>
    %24 = vector.extract_strided_slice %13 {offsets = [0, 64], sizes = [8, 32], strides = [1, 1]} : vector<8x128xf32> to vector<8x32xf32>
    %25 = vector.extract_strided_slice %13 {offsets = [0, 96], sizes = [8, 32], strides = [1, 1]} : vector<8x128xf32> to vector<8x32xf32>
    %26 = vector.shape_cast %22 : vector<8x32xf32> to vector<1x8x32xf32>
    %27 = vector.shape_cast %23 : vector<8x32xf32> to vector<1x8x32xf32>
    %28 = vector.shape_cast %24 : vector<8x32xf32> to vector<1x8x32xf32>
    %29 = vector.shape_cast %25 : vector<8x32xf32> to vector<1x8x32xf32>
    %30 = tpu.concatenate %26, %27, %28, %29 in 0 : vector<1x8x32xf32>, vector<1x8x32xf32>, vector<1x8x32xf32>, vector<1x8x32xf32> -> vector<4x8x32xf32>
    %31 = vector.extract_strided_slice %19 {offsets = [0, 0], sizes = [16, 32], strides = [1, 1]} : vector<16x128xf32> to vector<16x32xf32>
    %32 = vector.extract_strided_slice %19 {offsets = [0, 32], sizes = [16, 32], strides = [1, 1]} : vector<16x128xf32> to vector<16x32xf32>
    %33 = vector.extract_strided_slice %19 {offsets = [0, 64], sizes = [16, 32], strides = [1, 1]} : vector<16x128xf32> to vector<16x32xf32>
    %34 = vector.extract_strided_slice %19 {offsets = [0, 96], sizes = [16, 32], strides = [1, 1]} : vector<16x128xf32> to vector<16x32xf32>
    %35 = vector.shape_cast %31 : vector<16x32xf32> to vector<1x16x32xf32>
    %36 = vector.shape_cast %32 : vector<16x32xf32> to vector<1x16x32xf32>
    %37 = vector.shape_cast %33 : vector<16x32xf32> to vector<1x16x32xf32>
    %38 = vector.shape_cast %34 : vector<16x32xf32> to vector<1x16x32xf32>
    %39 = tpu.concatenate %35, %36, %37, %38 in 0 : vector<1x16x32xf32>, vector<1x16x32xf32>, vector<1x16x32xf32>, vector<1x16x32xf32> -> vector<4x16x32xf32>
    %40 = vector.extract_strided_slice %20 {offsets = [0, 0], sizes = [16, 32], strides = [1, 1]} : vector<16x128xf32> to vector<16x32xf32>
    %41 = vector.extract_strided_slice %20 {offsets = [0, 32], sizes = [16, 32], strides = [1, 1]} : vector<16x128xf32> to vector<16x32xf32>
    %42 = vector.extract_strided_slice %20 {offsets = [0, 64], sizes = [16, 32], strides = [1, 1]} : vector<16x128xf32> to vector<16x32xf32>
    %43 = vector.extract_strided_slice %20 {offsets = [0, 96], sizes = [16, 32], strides = [1, 1]} : vector<16x128xf32> to vector<16x32xf32>
    %44 = vector.shape_cast %40 : vector<16x32xf32> to vector<1x16x32xf32>
    %45 = vector.shape_cast %41 : vector<16x32xf32> to vector<1x16x32xf32>
    %46 = vector.shape_cast %42 : vector<16x32xf32> to vector<1x16x32xf32>
    %47 = vector.shape_cast %43 : vector<16x32xf32> to vector<1x16x32xf32>
    %48 = tpu.concatenate %44, %45, %46, %47 in 0 : vector<1x16x32xf32>, vector<1x16x32xf32>, vector<1x16x32xf32>, vector<1x16x32xf32> -> vector<4x16x32xf32>
    %49 = arith.truncf %30 : vector<4x8x32xf32> to vector<4x8x32xbf16>
    %50 = arith.truncf %39 : vector<4x16x32xf32> to vector<4x16x32xbf16>
    "tpu.trace_start"() <{level = 10 : i32, message = "nqd,nkd->nqk"}> : () -> ()
    %cst_16 = arith.constant dense<0.000000e+00> : vector<4x8x16xf32>
    %51 = tpu.matmul %49, %50, %cst_16 {dimension_numbers = #tpu.dot_dimension_numbers<[2], [2], [1], [1], [0, 0, 0, 1, 1, 1], [0], [0]>} : vector<4x8x32xbf16>, vector<4x16x32xbf16>, vector<4x8x16xf32> -> vector<4x8x16xf32>
    "tpu.trace_stop"() : () -> ()
    %cst_17 = arith.constant 0.176776692 : f32
    %52 = vector.broadcast %cst_17 : f32 to vector<4x8x16xf32>
    %53 = arith.mulf %51, %52 : vector<4x8x16xf32>
    %c0_18 = arith.constant 0 : index
    %c0_19 = arith.constant 0 : index
    %c0_20 = arith.constant 0 : index
    %54 = vector.load %arg2[%c0_18, %c0_19, %c0_20] : memref<1x1x16xf32, #tpu.memory_space<vmem>>, vector<1x1x16xf32>
    %55 = vector.shape_cast %54 : vector<1x1x16xf32> to vector<1x16xf32>
    %56 = vector.shape_cast %55 : vector<1x16xf32> to vector<1x1x16xf32>
    %57 = vector.broadcast %56 : vector<1x1x16xf32> to vector<4x8x16xf32>
    %58 = arith.addf %53, %57 : vector<4x8x16xf32>
    %cst_21 = arith.constant dense<0xFF800000> : vector<4x8xf32>
    %59 = vector.multi_reduction <maximumf>, %58, %cst_21 [2] : vector<4x8x16xf32> to vector<4x8xf32>
    %60 = vector.shape_cast %59 : vector<4x8xf32> to vector<4x8x1xf32>
    %61 = vector.broadcast %60 : vector<4x8x1xf32> to vector<4x8x16xf32>
    %62 = arith.subf %58, %61 : vector<4x8x16xf32>
    %63 = math.exp %62 : vector<4x8x16xf32>
    %cst_22 = arith.constant dense<0.000000e+00> : vector<4x8xf32>
    %64 = vector.multi_reduction <add>, %63, %cst_22 [2] : vector<4x8x16xf32> to vector<4x8xf32>
    %65 = vector.shape_cast %64 : vector<4x8xf32> to vector<4x8x1xf32>
    %66 = tpu.reciprocal %65 {approx = true} : vector<4x8x1xf32> -> vector<4x8x1xf32>
    %67 = vector.broadcast %66 : vector<4x8x1xf32> to vector<4x8x16xf32>
    %68 = arith.mulf %63, %67 : vector<4x8x16xf32>
    %69 = arith.truncf %68 : vector<4x8x16xf32> to vector<4x8x16xbf16>
    %70 = arith.truncf %48 : vector<4x16x32xf32> to vector<4x16x32xbf16>
    "tpu.trace_start"() <{level = 10 : i32, message = "nqk,nkd->nqd"}> : () -> ()
    %cst_23 = arith.constant dense<0.000000e+00> : vector<4x8x32xf32>
    %71 = tpu.matmul %69, %70, %cst_23 {dimension_numbers = #tpu.dot_dimension_numbers<[2], [1], [1], [2], [0, 0, 0, 1, 1, 2], [0], [0]>} : vector<4x8x16xbf16>, vector<4x16x32xbf16>, vector<4x8x32xf32> -> vector<4x8x32xf32>
    "tpu.trace_stop"() : () -> ()
    %72 = arith.truncf %71 : vector<4x8x32xf32> to vector<4x8x32xbf16>
    "tpu.trace_start"() <{level = 10 : i32, message = "nqd,ndh->nqh"}> : () -> ()
    %cst_24 = arith.constant dense<0.000000e+00> : vector<4x8x128xf32>
    %73 = tpu.matmul %72, %21, %cst_24 {dimension_numbers = #tpu.dot_dimension_numbers<[2], [1], [1], [2], [0, 0, 0, 1, 1, 2], [0], [0]>} : vector<4x8x32xbf16>, vector<4x32x128xbf16>, vector<4x8x128xf32> -> vector<4x8x128xf32>
    "tpu.trace_stop"() : () -> ()
    %cst_25 = arith.constant dense<0.000000e+00> : vector<8x128xf32>
    %74 = vector.multi_reduction <add>, %73, %cst_25 [0] : vector<4x8x128xf32> to vector<8x128xf32>
    %c0_26 = arith.constant 0 : index
    %c0_27 = arith.constant 0 : index
    %75 = vector.load %arg8[%c0_26, %c0_27] : memref<1x128xf32, #tpu.memory_space<vmem>>, vector<1x128xf32>
    %76 = vector.broadcast %75 : vector<1x128xf32> to vector<8x128xf32>
    %77 = arith.addf %74, %76 : vector<8x128xf32>
    %c0_28 = arith.constant 0 : index
    %c0_29 = arith.constant 0 : index
    %c0_30 = arith.constant 0 : index
    %78 = vector.load %arg9[%c0_28, %c0_29, %c0_30] : memref<1x8x128xf32, #tpu.memory_space<vmem>>, vector<1x8x128xf32>
    %79 = vector.shape_cast %78 : vector<1x8x128xf32> to vector<8x128xf32>
    %80 = vector.shape_cast %77 : vector<8x128xf32> to vector<1x8x128xf32>
    tpu.vector_store %arg9[%c0_28, %c0_29, %c0_30], %80 {strides = array<i32>} : memref<1x8x128xf32, #tpu.memory_space<vmem>>, vector<1x8x128xf32>,
    return
  }
  func.func @transform_0(%arg0: i32) -> (i32, i32, i32) {
    %c0_i32 = arith.constant 0 : i32
    %c0_i32_0 = arith.constant 0 : i32
    %c0_i32_1 = arith.constant 0 : i32
    return %arg0, %c0_i32, %c0_i32_0 : i32, i32, i32
  }
  func.func @transform_1(%arg0: i32) -> (i32, i32, i32) {
    %c0_i32 = arith.constant 0 : i32
    %c0_i32_0 = arith.constant 0 : i32
    %c0_i32_1 = arith.constant 0 : i32
    return %arg0, %c0_i32, %c0_i32_0 : i32, i32, i32
  }
  func.func @transform_2(%arg0: i32) -> (i32, i32) {
    %c0_i32 = arith.constant 0 : i32
    %c0_i32_0 = arith.constant 0 : i32
    %c0_i32_1 = arith.constant 0 : i32
    return %c0_i32, %c0_i32_0 : i32, i32
  }
  func.func @transform_3(%arg0: i32) -> (i32, i32) {
    %c0_i32 = arith.constant 0 : i32
    %c0_i32_0 = arith.constant 0 : i32
    %c0_i32_1 = arith.constant 0 : i32
    return %c0_i32, %c0_i32_0 : i32, i32
  }
  func.func @transform_4(%arg0: i32) -> (i32, i32) {
    %c0_i32 = arith.constant 0 : i32
    %c0_i32_0 = arith.constant 0 : i32
    %c0_i32_1 = arith.constant 0 : i32
    return %c0_i32, %c0_i32_0 : i32, i32
  }
  func.func @transform_5(%arg0: i32) -> (i32, i32) {
    %c0_i32 = arith.constant 0 : i32
    %c0_i32_0 = arith.constant 0 : i32
    %c0_i32_1 = arith.constant 0 : i32
    return %c0_i32, %c0_i32_0 : i32, i32
  }
  func.func @transform_6(%arg0: i32) -> (i32, i32, i32) {
    %c0_i32 = arith.constant 0 : i32
    %c0_i32_0 = arith.constant 0 : i32
    %c0_i32_1 = arith.constant 0 : i32
    %c0_i32_2 = arith.constant 0 : i32
    return %c0_i32, %c0_i32_0, %c0_i32_1 : i32, i32, i32
  }
  func.func @transform_7(%arg0: i32) -> (i32, i32) {
    %c0_i32 = arith.constant 0 : i32
    %c0_i32_0 = arith.constant 0 : i32
    %c0_i32_1 = arith.constant 0 : i32
    return %c0_i32, %c0_i32_0 : i32, i32
  }
  func.func @transform_8(%arg0: i32) -> (i32, i32, i32) {
    %c0_i32 = arith.constant 0 : i32
    %c0_i32_0 = arith.constant 0 : i32
    %c0_i32_1 = arith.constant 0 : i32
    return %arg0, %c0_i32, %c0_i32_0 : i32, i32, i32
  }
}

</mosaic_0001>

<llo_original>
// kernel: tpu_custom_call.1
$region0: #{tpu_custom_call.1}
  #allocation0 [shape = 'u32[]', space=smem, size = 0x4, offset = 0x4, fixed_abs, tag = 'smem constant byte address 0x4 - core index']
  #allocation1 [shape = 'u32[72,128]{1,0:T(1,128)}', space=vmem, size = 0x9000, scoped, tag = 'internal scratch']
  %s0 = inlined_call_operand.hbm [shape: bf16[2,16,128], index: 0, kind: input, shape index: {}]
  %s1 = inlined_call_operand.hbm [shape: f32[2,1,16], index: 1, kind: input, shape index: {}]
  %s2 = inlined_call_operand.hbm [shape: bf16[128,128], index: 2, kind: input, shape index: {}]
  %s3 = inlined_call_operand.vmem [shape: f32[1,128], index: 3, kind: input, shape index: {}]
  %s4 = inlined_call_operand.hbm [shape: bf16[128,256], index: 4, kind: input, shape index: {}]
  %s5 = inlined_call_operand.vmem [shape: f32[1,256], index: 5, kind: input, shape index: {}]
  %s6 = inlined_call_operand.hbm [shape: bf16[4,32,128], index: 6, kind: input, shape index: {}]
  %s7 = inlined_call_operand.vmem [shape: f32[1,128], index: 7, kind: input, shape index: {}]
  %s8 = inlined_call_operand.hbm [shape: f32[2,8,128], index: 8, kind: output, shape index: {}]
  %s9 = sld [smem:[#allocation0]]
  $region85: #{tpu_custom_call.1} parent=0
    _
  %s11 = ssub.s32 1, %s9
  %s12 = scalar_select 0, %s11, %s9
  $region1: #{tpu_custom_call.1} parent=0
    #allocation2 [shape = 'u8[8192]{0}', space=vmem, size = 0x2000, scoped, tag = 'input window, operand 0']
    #allocation3 [shape = 's32[2]{0}', space=sflag, size = 0x8, scoped, tag = 'scoped memory for tpu_custom_call.1']
    #allocation4 [shape = 's32[2]{0}', space=sflag, size = 0x8, scoped, tag = 'scoped memory for tpu_custom_call.1']
    #allocation5 [shape = 'u8[1024]{0}', space=vmem, size = 0x400, scoped, tag = 'input window, operand 1']
    #allocation6 [shape = 's32[2]{0}', space=sflag, size = 0x8, scoped, tag = 'scoped memory for tpu_custom_call.1']
    #allocation7 [shape = 'u8[32768]{0}', space=vmem, size = 0x8000, scoped, tag = 'input window, operand 2, single buffered']
    #allocation8 [shape = 'u8[65536]{0}', space=vmem, size = 0x10000, scoped, tag = 'input window, operand 4, single buffered']
    #allocation9 [shape = 's32[1]{0}', space=sflag, size = 0x4, scoped, tag = 'scoped memory for tpu_custom_call.1']
    #allocation10 [shape = 'u8[32768]{0}', space=vmem, size = 0x8000, scoped, tag = 'input window, operand 6, single buffered']
    #allocation11 [shape = 'u8[8192]{0}', space=vmem, size = 0x2000, scoped, tag = 'output window, operand 0']
    %13 = vsyncpa [#allocation3], 0
    %s14 = scalar_lea.sflag [#allocation3], 1
    %15 = vsyncpa %s14, 0
    %16 = vsyncpa [#allocation6], 0
    %s17 = scalar_lea.sflag [#allocation6], 1
    %18 = vsyncpa %s17, 0
    %19 = vsyncpa [#allocation9], 0
    %20 = vsyncpa [#allocation4], 0
    %s21 = scalar_lea.sflag [#allocation4], 1
    %22 = vsyncpa %s21, 0
    loop: start=0, step=1, limit=4
    $region2: #{tpu_custom_call.1} parent=1 // loop_pre_header
      _
    $region3: #{tpu_custom_call.1} parent=1 // loop_header
      %s24 = sphi 0, %s28
      %p25 = scmp.ge.s32.totalorder %s24, 4
      %s34 = sphi 0, %s36
      %s37 = sphi 0, %s34
      %s38 = sphi 0, %s37
      %s54 = sphi 0, %s38
      %s60 = sphi 0, %s62
      %s63 = sphi 0, %s60
      %s64 = sphi 0, %s63
      %s80 = sphi 0, %s64
      %s84 = sphi 0, %s84
      %s86 = sphi 0, %s84
      %s87 = sphi 0, %s86
      %s101 = sphi 0, %s87
      %s105 = sphi 0, %s105
      %s107 = sphi 0, %s105
      %s108 = sphi 0, %s107
      %s122 = sphi 0, %s108
      %s126 = sphi 0, %s126
      %s128 = sphi 0, %s126
      %s129 = sphi 0, %s128
      %s143 = sphi 0, %s129
      %s147 = sphi 0, %s147
      %s149 = sphi 0, %s147
      %s150 = sphi 0, %s149
      %s164 = sphi 0, %s150
      %s168 = sphi 0, %s168
      %s170 = sphi 0, %s168
      %s171 = sphi 0, %s170
      %s185 = sphi 0, %s171
      %s189 = sphi 0, %s189
      %s191 = sphi 0, %s189
      %s192 = sphi 0, %s191
      %s206 = sphi 0, %s192
      %s212 = sphi 0, %s214
      %s215 = sphi 0, %s212
      %s216 = sphi 0, %s215
      %s232 = sphi 0, %s216
    $region4: #{tpu_custom_call.1} parent=1 // loop_header_branch
      %27 = sbr.rel (%p25) target = $region8
    $region5: #{tpu_custom_call.1} parent=1 // loop_body
      %s29 = ssub.s32 %s24, 1
      %s30 = ssub.s32 %s24, 2
      %s31 = sadd.s32 %s24, 1
      %s32 = ssub.s32 %s24, %s31
      %p33 = scmp.eq.s32.totalorder %s32, 0
      %s35 = sadd.s32 %s34, 1
      %s36 = scalar_select %p33, %s34, %s35
      %p39 = pneg %p33
      %p40 = scmp.eq.s32.totalorder %s24, 1
      %p41 = por %p39, %p40
      %p42 = scmp.ne.s32.totalorder %s34, %s37
      %p43 = scmp.eq.s32.totalorder %s24, 0
      %p44 = por %p42, %p43
      %p45 = scmp.ne.s32.totalorder %s34, %s37
      %p46 = scmp.eq.s32.totalorder %s29, 1
      %p47 = por %p45, %p46
      %p48 = scmp.ne.s32.totalorder %s37, %s38
      %p49 = scmp.eq.s32.totalorder %s29, 0
      %p50 = por %p48, %p49
      %p51 = scmp.ne.s32.totalorder %s37, %s38
      %p52 = scmp.eq.s32.totalorder %s30, 1
      %p53 = por %p51, %p52
      %p55 = scmp.ne.s32.totalorder %s38, %s54
      %p56 = scmp.eq.s32.totalorder %s30, 0
      %p57 = por %p55, %p56
      %s58 = ssub.s32 %s24, %s31
      %p59 = scmp.eq.s32.totalorder %s58, 0
      %s61 = sadd.s32 %s60, 1
      %s62 = scalar_select %p59, %s60, %s61
      %p65 = pneg %p59
      %p66 = scmp.eq.s32.totalorder %s24, 1
      %p67 = por %p65, %p66
      %p68 = scmp.ne.s32.totalorder %s60, %s63
      %p69 = scmp.eq.s32.totalorder %s24, 0
      %p70 = por %p68, %p69
      %p71 = scmp.ne.s32.totalorder %s60, %s63
      %p72 = scmp.eq.s32.totalorder %s29, 1
      %p73 = por %p71, %p72
      %p74 = scmp.ne.s32.totalorder %s63, %s64
      %p75 = scmp.eq.s32.totalorder %s29, 0
      %p76 = por %p74, %p75
      %p77 = scmp.ne.s32.totalorder %s63, %s64
      %p78 = scmp.eq.s32.totalorder %s30, 1
      %p79 = por %p77, %p78
      %p81 = scmp.ne.s32.totalorder %s64, %s80
      %p82 = scmp.eq.s32.totalorder %s30, 0
      %p83 = por %p81, %p82
      %s85 = sadd.s32 %s84, 1
      %p88 = scmp.eq.s32.totalorder %s24, 1
      %p89 = scmp.ne.s32.totalorder %s84, %s86
      %p90 = scmp.eq.s32.totalorder %s24, 0
      %p91 = por %p89, %p90
      %p92 = scmp.ne.s32.totalorder %s84, %s86
      %p93 = scmp.eq.s32.totalorder %s29, 1
      %p94 = por %p92, %p93
      %p95 = scmp.ne.s32.totalorder %s86, %s87
      %p96 = scmp.eq.s32.totalorder %s29, 0
      %p97 = por %p95, %p96
      %p98 = scmp.ne.s32.totalorder %s86, %s87
      %p99 = scmp.eq.s32.totalorder %s30, 1
      %p100 = por %p98, %p99
      %p102 = scmp.ne.s32.totalorder %s87, %s101
      %p103 = scmp.eq.s32.totalorder %s30, 0
      %p104 = por %p102, %p103
      %s106 = sadd.s32 %s105, 1
      %p109 = scmp.eq.s32.totalorder %s24, 1
      %p110 = scmp.ne.s32.totalorder %s105, %s107
      %p111 = scmp.eq.s32.totalorder %s24, 0
      %p112 = por %p110, %p111
      %p113 = scmp.ne.s32.totalorder %s105, %s107
      %p114 = scmp.eq.s32.totalorder %s29, 1
      %p115 = por %p113, %p114
      %p116 = scmp.ne.s32.totalorder %s107, %s108
      %p117 = scmp.eq.s32.totalorder %s29, 0
      %p118 = por %p116, %p117
      %p119 = scmp.ne.s32.totalorder %s107, %s108
      %p120 = scmp.eq.s32.totalorder %s30, 1
      %p121 = por %p119, %p120
      %p123 = scmp.ne.s32.totalorder %s108, %s122
      %p124 = scmp.eq.s32.totalorder %s30, 0
      %p125 = por %p123, %p124
      %s127 = sadd.s32 %s126, 1
      %p130 = scmp.eq.s32.totalorder %s24, 1
      %p131 = scmp.ne.s32.totalorder %s126, %s128
      %p132 = scmp.eq.s32.totalorder %s24, 0
      %p133 = por %p131, %p132
      %p134 = scmp.ne.s32.totalorder %s126, %s128
      %p135 = scmp.eq.s32.totalorder %s29, 1
      %p136 = por %p134, %p135
      %p137 = scmp.ne.s32.totalorder %s128, %s129
      %p138 = scmp.eq.s32.totalorder %s29, 0
      %p139 = por %p137, %p138
      %p140 = scmp.ne.s32.totalorder %s128, %s129
      %p141 = scmp.eq.s32.totalorder %s30, 1
      %p142 = por %p140, %p141
      %p144 = scmp.ne.s32.totalorder %s129, %s143
      %p145 = scmp.eq.s32.totalorder %s30, 0
      %p146 = por %p144, %p145
      %s148 = sadd.s32 %s147, 1
      %p151 = scmp.eq.s32.totalorder %s24, 1
      %p152 = scmp.ne.s32.totalorder %s147, %s149
      %p153 = scmp.eq.s32.totalorder %s24, 0
      %p154 = por %p152, %p153
      %p155 = scmp.ne.s32.totalorder %s147, %s149
      %p156 = scmp.eq.s32.totalorder %s29, 1
      %p157 = por %p155, %p156
      %p158 = scmp.ne.s32.totalorder %s149, %s150
      %p159 = scmp.eq.s32.totalorder %s29, 0
      %p160 = por %p158, %p159
      %p161 = scmp.ne.s32.totalorder %s149, %s150
      %p162 = scmp.eq.s32.totalorder %s30, 1
      %p163 = por %p161, %p162
      %p165 = scmp.ne.s32.totalorder %s150, %s164
      %p166 = scmp.eq.s32.totalorder %s30, 0
      %p167 = por %p165, %p166
      %s169 = sadd.s32 %s168, 1
      %p172 = scmp.eq.s32.totalorder %s24, 1
      %p173 = scmp.ne.s32.totalorder %s168, %s170
      %p174 = scmp.eq.s32.totalorder %s24, 0
      %p175 = por %p173, %p174
      %p176 = scmp.ne.s32.totalorder %s168, %s170
      %p177 = scmp.eq.s32.totalorder %s29, 1
      %p178 = por %p176, %p177
      %p179 = scmp.ne.s32.totalorder %s170, %s171
      %p180 = scmp.eq.s32.totalorder %s29, 0
      %p181 = por %p179, %p180
      %p182 = scmp.ne.s32.totalorder %s170, %s171
      %p183 = scmp.eq.s32.totalorder %s30, 1
      %p184 = por %p182, %p183
      %p186 = scmp.ne.s32.totalorder %s171, %s185
      %p187 = scmp.eq.s32.totalorder %s30, 0
      %p188 = por %p186, %p187
      %s190 = sadd.s32 %s189, 1
      %p193 = scmp.eq.s32.totalorder %s24, 1
      %p194 = scmp.ne.s32.totalorder %s189, %s191
      %p195 = scmp.eq.s32.totalorder %s24, 0
      %p196 = por %p194, %p195
      %p197 = scmp.ne.s32.totalorder %s189, %s191
      %p198 = scmp.eq.s32.totalorder %s29, 1
      %p199 = por %p197, %p198
      %p200 = scmp.ne.s32.totalorder %s191, %s192
      %p201 = scmp.eq.s32.totalorder %s29, 0
      %p202 = por %p200, %p201
      %p203 = scmp.ne.s32.totalorder %s191, %s192
      %p204 = scmp.eq.s32.totalorder %s30, 1
      %p205 = por %p203, %p204
      %p207 = scmp.ne.s32.totalorder %s192, %s206
      %p208 = scmp.eq.s32.totalorder %s30, 0
      %p209 = por %p207, %p208
      %s210 = ssub.s32 %s24, %s31
      %p211 = scmp.eq.s32.totalorder %s210, 0
      %s213 = sadd.s32 %s212, 1
      %s214 = scalar_select %p211, %s212, %s213
      %p217 = pneg %p211
      %p218 = scmp.eq.s32.totalorder %s24, 1
      %p219 = por %p217, %p218
      %p220 = scmp.ne.s32.totalorder %s212, %s215
      %p221 = scmp.eq.s32.totalorder %s24, 0
      %p222 = por %p220, %p221
      %p223 = scmp.ne.s32.totalorder %s212, %s215
      %p224 = scmp.eq.s32.totalorder %s29, 1
      %p225 = por %p223, %p224
      %p226 = scmp.ne.s32.totalorder %s215, %s216
      %p227 = scmp.eq.s32.totalorder %s29, 0
      %p228 = por %p226, %p227
      %p229 = scmp.ne.s32.totalorder %s215, %s216
      %p230 = scmp.eq.s32.totalorder %s30, 1
      %p231 = por %p229, %p230
      %p233 = scmp.ne.s32.totalorder %s216, %s232
      %p234 = scmp.eq.s32.totalorder %s30, 0
      %p235 = por %p233, %p234
      %p236 = scmp.le.s32.totalorder 1, %s24
      %p237 = scmp.lt.s32.totalorder %s24, 3
      %p238 = pnand %p236, %p237
      %p239 = pneg %p238
      // Predicated region
      $region9: #{tpu_custom_call.1} parent=5 // pred_check
        _
      $region10: #{tpu_custom_call.1} parent=5 // pred_check_branch
        %241 = sbr.rel (%p238) target = $region12
      $region11: #{tpu_custom_call.1} parent=5 // pred_region
        %s242 = ssub.s32 %s24, 1
        // Predicated region
        $region13: #{tpu_custom_call.1} parent=11 // pred_check
          %p243 = pneg %p97
        $region14: #{tpu_custom_call.1} parent=11 // pred_check_branch
          %245 = sbr.rel (%p243) target = $region16
        $region15: #{tpu_custom_call.1} parent=11 // pred_region
          %247 = vsyncadd [#allocation6], 0
          %s248 = sshll.u32 %s2, 4
          %s249 = int_to_ptr.hbm [resolvable:$true] %s248
          %s250 = sshll.u32 [#allocation7], 4
          %s251 = int_to_ptr.vmem [resolvable:$true] %s250
          %256 = dma.hbm_to_vmem [thread:$0]  %s249, 1024, %s251, [#allocation6], 64, 64, 4
        $region16: #{tpu_custom_call.1} parent=11 // pred_fallthru
          _
        // Predicated region
        $region17: #{tpu_custom_call.1} parent=11 // pred_check
          %p257 = pneg %p118
        $region18: #{tpu_custom_call.1} parent=11 // pred_check_branch
          %259 = sbr.rel (%p257) target = $region20
        $region19: #{tpu_custom_call.1} parent=11 // pred_region
          _
        $region20: #{tpu_custom_call.1} parent=11 // pred_fallthru
          _
        // Predicated region
        $region21: #{tpu_custom_call.1} parent=11 // pred_check
          %p260 = pneg %p139
        $region22: #{tpu_custom_call.1} parent=11 // pred_check_branch
          %262 = sbr.rel (%p260) target = $region24
        $region23: #{tpu_custom_call.1} parent=11 // pred_region
          %264 = vsyncadd [#allocation9], 0
          %s265 = sshll.u32 %s4, 4
          %s266 = int_to_ptr.hbm [resolvable:$true] %s265
          %s267 = sshll.u32 [#allocation8], 4
          %s268 = int_to_ptr.vmem [resolvable:$true] %s267
          %273 = dma.hbm_to_vmem [thread:$0]  %s266, 2048, %s268, [#allocation9], 128, 128, 8
        $region24: #{tpu_custom_call.1} parent=11 // pred_fallthru
          _
        // Predicated region
        $region25: #{tpu_custom_call.1} parent=11 // pred_check
          %p274 = pneg %p160
        $region26: #{tpu_custom_call.1} parent=11 // pred_check_branch
          %276 = sbr.rel (%p274) target = $region28
        $region27: #{tpu_custom_call.1} parent=11 // pred_region
          _
        $region28: #{tpu_custom_call.1} parent=11 // pred_fallthru
          _
        // Predicated region
        $region29: #{tpu_custom_call.1} parent=11 // pred_check
          %p277 = pneg %p181
        $region30: #{tpu_custom_call.1} parent=11 // pred_check_branch
          %279 = sbr.rel (%p277) target = $region32
        $region31: #{tpu_custom_call.1} parent=11 // pred_region
          %281 = vsyncadd [#allocation9], 0
          %s282 = sshll.u32 %s6, 4
          %s283 = int_to_ptr.hbm [resolvable:$true] %s282
          %s284 = sshll.u32 [#allocation10], 4
          %s285 = int_to_ptr.vmem [resolvable:$true] %s284
          %290 = dma.hbm_to_vmem [thread:$0]  %s283, 1024, %s285, [#allocation9], 64, 64, 4
        $region32: #{tpu_custom_call.1} parent=11 // pred_fallthru
          _
        // Predicated region
        $region33: #{tpu_custom_call.1} parent=11 // pred_check
          %p291 = pneg %p202
        $region34: #{tpu_custom_call.1} parent=11 // pred_check_branch
          %293 = sbr.rel (%p291) target = $region36
        $region35: #{tpu_custom_call.1} parent=11 // pred_region
          _
        $region36: #{tpu_custom_call.1} parent=11 // pred_fallthru
          _
      $region12: #{tpu_custom_call.1} parent=5 // pred_fallthru
        _
      %p294 = scmp.lt.s32.totalorder %s24, 2
      // Predicated region
      $region37: #{tpu_custom_call.1} parent=5 // pred_check
        %p295 = pneg %p294
      $region38: #{tpu_custom_call.1} parent=5 // pred_check_branch
        %297 = sbr.rel (%p295) target = $region40
      $region39: #{tpu_custom_call.1} parent=5 // pred_region
        // Predicated region
        $region41: #{tpu_custom_call.1} parent=39 // pred_check
          %p298 = pneg %p44
        $region42: #{tpu_custom_call.1} parent=39 // pred_check_branch
          %300 = sbr.rel (%p298) target = $region44
        $region43: #{tpu_custom_call.1} parent=39 // pred_region
          %s301 = sand.u32 %s34, 1
          %s302 = scalar_lea.sflag [#allocation3], %s301
          %s303 = sand.u32 %s34, 1
          %s304 = smul.addr %s303, 8
          %s305 = scalar_lea.vmem [#allocation2], %s304
          %307 = vsyncadd %s302, 0
          %s308 = smul.addr %s24, 2
          %s309 = smul.addr %s308, 4
          %s310 = scalar_lea.hbm %s0, %s309
          %s311 = sshll.u32 %s310, 4
          %s312 = int_to_ptr.hbm [resolvable:$true] %s311
          %s313 = sshll.u32 %s305, 4
          %s314 = int_to_ptr.vmem [resolvable:$true] %s313
          %319 = dma.hbm_to_vmem [thread:$0]  %s312, 128, %s314, %s302, 64, 64, 4
        $region44: #{tpu_custom_call.1} parent=39 // pred_fallthru
          _
        // Predicated region
        $region45: #{tpu_custom_call.1} parent=39 // pred_check
          %p320 = pneg %p70
        $region46: #{tpu_custom_call.1} parent=39 // pred_check_branch
          %322 = sbr.rel (%p320) target = $region48
        $region47: #{tpu_custom_call.1} parent=39 // pred_region
          %s323 = sand.u32 %s24, 1
          %s324 = scalar_lea.sflag [#allocation6], %s323
          %s325 = sand.u32 %s60, 1
          %s326 = scalar_lea.vmem [#allocation5], %s325
          %328 = vsyncadd %s324, 0
          %s329 = scalar_lea.hbm %s1, %s24
          %s331 = sshll.u32 %s329, 4
          %s332 = int_to_ptr.hbm [resolvable:$true] %s331
          %s333 = sshll.u32 %s326, 4
          %s334 = int_to_ptr.vmem [resolvable:$true] %s333
          %336 = dma.hbm_to_vmem [thread:$0]  %s332, 16, %s334, %s324
        $region48: #{tpu_custom_call.1} parent=39 // pred_fallthru
          _
      $region40: #{tpu_custom_call.1} parent=5 // pred_fallthru
        _
      %p337 = scmp.le.s32.totalorder 1, %s24
      %p338 = scmp.lt.s32.totalorder %s24, 3
      %p339 = pnand %p337, %p338
      %p340 = pneg %p339
      // Predicated region
      $region49: #{tpu_custom_call.1} parent=5 // pred_check
        _
      $region50: #{tpu_custom_call.1} parent=5 // pred_check_branch
        %342 = sbr.rel (%p339) target = $region52
      $region51: #{tpu_custom_call.1} parent=5 // pred_region
        %s343 = ssub.s32 %s24, 1
        %s344 = sand.u32 %s37, 1
        %s345 = scalar_lea.sflag [#allocation3], %s344
        %s346 = sand.u32 %s37, 1
        %s347 = smul.addr %s346, 8
        %s348 = scalar_lea.vmem [#allocation2], %s347
        // Predicated region
        $region53: #{tpu_custom_call.1} parent=51 // pred_check
          %p349 = pneg %p50
        $region54: #{tpu_custom_call.1} parent=51 // pred_check_branch
          %351 = sbr.rel (%p349) target = $region56
        $region55: #{tpu_custom_call.1} parent=51 // pred_region
          %353 = dma.done %s345, 128
        $region56: #{tpu_custom_call.1} parent=51 // pred_fallthru
          _
        %s354 = sand.u32 %s29, 1
        %s355 = scalar_lea.sflag [#allocation6], %s354
        %s356 = sand.u32 %s63, 1
        %s357 = scalar_lea.vmem [#allocation5], %s356
        // Predicated region
        $region57: #{tpu_custom_call.1} parent=51 // pred_check
          %p358 = pneg %p76
        $region58: #{tpu_custom_call.1} parent=51 // pred_check_branch
          %360 = sbr.rel (%p358) target = $region60
        $region59: #{tpu_custom_call.1} parent=51 // pred_region
          %362 = dma.done %s355, 16
        $region60: #{tpu_custom_call.1} parent=51 // pred_fallthru
          _
        // Predicated region
        $region61: #{tpu_custom_call.1} parent=51 // pred_check
          %p363 = pneg %p97
        $region62: #{tpu_custom_call.1} parent=51 // pred_check_branch
          %365 = sbr.rel (%p363) target = $region64
        $region63: #{tpu_custom_call.1} parent=51 // pred_region
          %367 = dma.done [#allocation6], 1024
        $region64: #{tpu_custom_call.1} parent=51 // pred_fallthru
          _
        // Predicated region
        $region65: #{tpu_custom_call.1} parent=51 // pred_check
          %p368 = pneg %p139
        $region66: #{tpu_custom_call.1} parent=51 // pred_check_branch
          %370 = sbr.rel (%p368) target = $region68
        $region67: #{tpu_custom_call.1} parent=51 // pred_region
          %372 = dma.done [#allocation9], 2048
        $region68: #{tpu_custom_call.1} parent=51 // pred_fallthru
          _
        // Predicated region
        $region69: #{tpu_custom_call.1} parent=51 // pred_check
          %p373 = pneg %p181
        $region70: #{tpu_custom_call.1} parent=51 // pred_check_branch
          %375 = sbr.rel (%p373) target = $region72
        $region71: #{tpu_custom_call.1} parent=51 // pred_region
          %377 = dma.done [#allocation9], 1024
        $region72: #{tpu_custom_call.1} parent=51 // pred_fallthru
          _
        %s378 = sand.u32 %s37, 1
        %s379 = scalar_lea.sflag [#allocation3], %s378
        %s380 = sand.u32 %s37, 1
        %s381 = smul.addr %s380, 8
        %s382 = scalar_lea.vmem [#allocation2], %s381
        %p383 = pneg %p50
        %p384 = pneg %p47
        %s385 = sand.u32 %s29, 1
        %s386 = scalar_lea.sflag [#allocation6], %s385
        %s387 = sand.u32 %s63, 1
        %s388 = scalar_lea.vmem [#allocation5], %s387
        %p389 = pneg %p76
        %p390 = pneg %p73
        %p391 = pneg %p97
        %p392 = pneg %p94
        %p393 = pneg %p118
        %p394 = pneg %p115
        %p395 = pneg %p139
        %p396 = pneg %p136
        %p397 = pneg %p160
        %p398 = pneg %p157
        %p399 = pneg %p181
        %p400 = pneg %p178
        %p401 = pneg %p202
        %p402 = pneg %p199
        %p403 = pneg %p228
        %p404 = pneg %p225
        %s405 = sand.u32 %s215, 1
        %s406 = scalar_lea.sflag [#allocation4], %s405
        %s407 = sand.u32 %s215, 1
        %s408 = smul.addr %s407, 8
        %s409 = scalar_lea.vmem [#allocation11], %s408
        %v411 = vld [vmem:[%s348] sm:$0xf]
        %v412 = vld [vmem:[%s348 + $0x4] sm:$0xf]
        %v413 = vunpack.c.l.bf16 %v411
        %v414 = vunpack.c.l.bf16 %v412
        %v415 = vadd.f32 %v413, %v414
        %v416 = vrcp.pop 2.0
        %v417 = vmul.f32 2.0, %v416
        %v418 = vsub.f32 1.0, %v417
        %v419 = vmul.f32 %v416, %v418
        %v420 = vadd.f32 %v416, %v419
        %vm421 = vweird.f32 %v416
        %v422 = vsel %vm421, %v416, %v420
        %v423 = vmul.f32 %v415, %v422
        %v424 = vpack.c.bf16 %v423, %v423
        %v425 = vld [vmem:[#allocation7] sm:$0xf]
        %v426 = vld [vmem:[#allocation7 + $0x4] sm:$0xf]
        %v427 = vld [vmem:[#allocation7 + $0x8] sm:$0xf]
        %v428 = vld [vmem:[#allocation7 + $0xc] sm:$0xf]
        %v429 = vld [vmem:[#allocation7 + $0x10] sm:$0xf]
        %v430 = vld [vmem:[#allocation7 + $0x14] sm:$0xf]
        %v431 = vld [vmem:[#allocation7 + $0x18] sm:$0xf]
        %v432 = vld [vmem:[#allocation7 + $0x1c] sm:$0xf]
        %v433 = vld [vmem:[#allocation7 + $0x20] sm:$0xf]
        %v434 = vld [vmem:[#allocation7 + $0x24] sm:$0xf]
        %v435 = vld [vmem:[#allocation7 + $0x28] sm:$0xf]
        %v436 = vld [vmem:[#allocation7 + $0x2c] sm:$0xf]
        %v437 = vld [vmem:[#allocation7 + $0x30] sm:$0xf]
        %v438 = vld [vmem:[#allocation7 + $0x34] sm:$0xf]
        %v439 = vld [vmem:[#allocation7 + $0x38] sm:$0xf]
        %v440 = vld [vmem:[#allocation7 + $0x3c] sm:$0xf]
        %v441 = vld [vmem:[%s3] sm:$0x1]
        %v443 = vperm.slane %v441, 0
        %v461 = vunpack.c.l.b16 %v425
        %v462 = vunpack.c.l.b16 %v426
        %v463 = vunpack.c.l.b16 %v427
        %v464 = vunpack.c.l.b16 %v428
        %v465 = vunpack.c.l.b16 %v429
        %v466 = vunpack.c.l.b16 %v430
        %v467 = vunpack.c.l.b16 %v431
        %v468 = vunpack.c.l.b16 %v432
        %v469 = vunpack.c.l.b16 %v433
        %v470 = vunpack.c.l.b16 %v434
        %v471 = vunpack.c.l.b16 %v435
        %v472 = vunpack.c.l.b16 %v436
        %v473 = vunpack.c.l.b16 %v437
        %v474 = vunpack.c.l.b16 %v438
        %v475 = vunpack.c.l.b16 %v439
        %v476 = vunpack.c.l.b16 %v440
        %v477 = vpack.c.b16 %v462, %v461
        %v478 = vpack.c.b16 %v464, %v463
        %v479 = vpack.c.b16 %v466, %v465
        %v480 = vpack.c.b16 %v468, %v467
        %v481 = vpack.c.b16 %v470, %v469
        %v482 = vpack.c.b16 %v472, %v471
        %v483 = vpack.c.b16 %v474, %v473
        %v484 = vpack.c.b16 %v476, %v475
        %493 = vmatpush.bf16.msra.mxu0 %v484
        %494 = vmatpush.bf16.msra.mxu0 %v483
        %495 = vmatpush.bf16.msra.mxu0 %v482
        %496 = vmatpush.bf16.msra.mxu0 %v481
        %497 = vmatpush.bf16.msra.mxu0 %v480
        %498 = vmatpush.bf16.msra.mxu0 %v479
        %499 = vmatpush.bf16.msra.mxu0 %v478
        %500 = vmatpush.bf16.msra.mxu0 %v477
        %501 = vmatmul.bf16.gmra.mxu0 %v424
        %v502 = vpop.f32.mrf.mxu0
        %v503 = vadd.f32 %v443, %v502
        %v504 = vpop.f32.mrf.mxu0
        %505 = vdwg.mxu0
        %v506 = vld [vmem:[#allocation8] sm:$0xff]
        %v507 = vld [vmem:[#allocation8 + $0x8] sm:$0xff]
        %v508 = vld [vmem:[#allocation8 + $0x10] sm:$0xff]
        %v509 = vld [vmem:[#allocation8 + $0x18] sm:$0xff]
        %v510 = vld [vmem:[#allocation8 + $0x20] sm:$0xff]
        %v511 = vld [vmem:[#allocation8 + $0x28] sm:$0xff]
        %v512 = vld [vmem:[#allocation8 + $0x30] sm:$0xff]
        %v513 = vld [vmem:[#allocation8 + $0x38] sm:$0xff]
        %v514 = vld [vmem:[#allocation8 + $0x40] sm:$0xff]
        %v515 = vld [vmem:[#allocation8 + $0x48] sm:$0xff]
        %v516 = vld [vmem:[#allocation8 + $0x50] sm:$0xff]
        %v517 = vld [vmem:[#allocation8 + $0x58] sm:$0xff]
        %v518 = vld [vmem:[#allocation8 + $0x60] sm:$0xff]
        %v519 = vld [vmem:[#allocation8 + $0x68] sm:$0xff]
        %v520 = vld [vmem:[#allocation8 + $0x70] sm:$0xff]
        %v521 = vld [vmem:[#allocation8 + $0x78] sm:$0xff]
        %v522 = vld [vmem:[%s5] sm:$0x3]
        %v524 = vperm.slane %v522, 0
        %v525 = vperm.slane %v522, 1
        %v530 = vunpack.c.l.b16 %v411
        %v531 = vunpack.c.l.b16 %v412
        %v532 = vpack.c.b16 %v531, %v530
        %v550 = vunpack.c.l.b16 %v506
        %v551 = vunpack.c.h.b16 %v506
        %v552 = vunpack.c.l.b16 %v507
        %v553 = vunpack.c.h.b16 %v507
        %v554 = vunpack.c.l.b16 %v508
        %v555 = vunpack.c.h.b16 %v508
        %v556 = vunpack.c.l.b16 %v509
        %v557 = vunpack.c.h.b16 %v509
        %v558 = vunpack.c.l.b16 %v510
        %v559 = vunpack.c.h.b16 %v510
        %v560 = vunpack.c.l.b16 %v511
        %v561 = vunpack.c.h.b16 %v511
        %v562 = vunpack.c.l.b16 %v512
        %v563 = vunpack.c.h.b16 %v512
        %v564 = vunpack.c.l.b16 %v513
        %v565 = vunpack.c.h.b16 %v513
        %v566 = vunpack.c.l.b16 %v514
        %v567 = vunpack.c.h.b16 %v514
        %v568 = vunpack.c.l.b16 %v515
        %v569 = vunpack.c.h.b16 %v515
        %v570 = vunpack.c.l.b16 %v516
        %v571 = vunpack.c.h.b16 %v516
        %v572 = vunpack.c.l.b16 %v517
        %v573 = vunpack.c.h.b16 %v517
        %v574 = vunpack.c.l.b16 %v518
        %v575 = vunpack.c.h.b16 %v518
        %v576 = vunpack.c.l.b16 %v519
        %v577 = vunpack.c.h.b16 %v519
        %v578 = vunpack.c.l.b16 %v520
        %v579 = vunpack.c.h.b16 %v520
        %v580 = vunpack.c.l.b16 %v521
        %v581 = vunpack.c.h.b16 %v521
        %v582 = vpack.c.b16 %v552, %v550
        %v583 = vpack.c.b16 %v553, %v551
        %v584 = vpack.c.b16 %v556, %v554
        %v585 = vpack.c.b16 %v557, %v555
        %v586 = vpack.c.b16 %v560, %v558
        %v587 = vpack.c.b16 %v561, %v559
        %v588 = vpack.c.b16 %v564, %v562
        %v589 = vpack.c.b16 %v565, %v563
        %v590 = vpack.c.b16 %v568, %v566
        %v591 = vpack.c.b16 %v569, %v567
        %v592 = vpack.c.b16 %v572, %v570
        %v593 = vpack.c.b16 %v573, %v571
        %v594 = vpack.c.b16 %v576, %v574
        %v595 = vpack.c.b16 %v577, %v575
        %v596 = vpack.c.b16 %v580, %v578
        %v597 = vpack.c.b16 %v581, %v579
        %614 = vmatpush.bf16.msra.mxu0 %v596
        %615 = vmatpush.bf16.msra.mxu0 %v594
        %616 = vmatpush.bf16.msra.mxu0 %v592
        %617 = vmatpush.bf16.msra.mxu0 %v590
        %618 = vmatpush.bf16.msra.mxu0 %v588
        %619 = vmatpush.bf16.msra.mxu0 %v586
        %620 = vmatpush.bf16.msra.mxu0 %v584
        %621 = vmatpush.bf16.msra.mxu0 %v582
        %622 = vmatmul.bf16.gmra.mxu0 %v532
        %v623 = vpop.f32.mrf.mxu0
        %v624 = vadd.f32 %v524, %v623
        %v625 = vpop.f32.mrf.mxu0
        %v626 = vadd.f32 %v524, %v625
        %627 = vdwg.mxu0
        %628 = vmatpush.bf16.msra.mxu0 %v597
        %629 = vmatpush.bf16.msra.mxu0 %v595
        %630 = vmatpush.bf16.msra.mxu0 %v593
        %631 = vmatpush.bf16.msra.mxu0 %v591
        %632 = vmatpush.bf16.msra.mxu0 %v589
        %633 = vmatpush.bf16.msra.mxu0 %v587
        %634 = vmatpush.bf16.msra.mxu0 %v585
        %635 = vmatpush.bf16.msra.mxu0 %v583
        %636 = vmatmul.bf16.gmra.mxu0 %v532
        %v637 = vpop.f32.mrf.mxu0
        %v638 = vadd.f32 %v525, %v637
        %v639 = vpop.f32.mrf.mxu0
        %v640 = vadd.f32 %v525, %v639
        %641 = vdwg.mxu0
        %v642 = vld [vmem:[#allocation10] sm:$0xf]
        %v643 = vld [vmem:[#allocation10 + $0x4] sm:$0xf]
        %v644 = vld [vmem:[#allocation10 + $0x8] sm:$0xf]
        %v645 = vld [vmem:[#allocation10 + $0xc] sm:$0xf]
        %v646 = vld [vmem:[#allocation10 + $0x10] sm:$0xf]
        %v647 = vld [vmem:[#allocation10 + $0x14] sm:$0xf]
        %v648 = vld [vmem:[#allocation10 + $0x18] sm:$0xf]
        %v649 = vld [vmem:[#allocation10 + $0x1c] sm:$0xf]
        %v650 = vld [vmem:[#allocation10 + $0x20] sm:$0xf]
        %v651 = vld [vmem:[#allocation10 + $0x24] sm:$0xf]
        %v652 = vld [vmem:[#allocation10 + $0x28] sm:$0xf]
        %v653 = vld [vmem:[#allocation10 + $0x2c] sm:$0xf]
        %v654 = vld [vmem:[#allocation10 + $0x30] sm:$0xf]
        %v655 = vld [vmem:[#allocation10 + $0x34] sm:$0xf]
        %v656 = vld [vmem:[#allocation10 + $0x38] sm:$0xf]
        %v657 = vld [vmem:[#allocation10 + $0x3c] sm:$0xf]
        %659 = vrot.lane.b32.xlu0 %v503, 96
        %v660 = vpop.permute.xlu0 %659
        %662 = vrot.lane.b32.xlu0 %v503, 64
        %v663 = vpop.permute.xlu0 %662
        %665 = vrot.lane.b32.xlu0 %v503, 32
        %v666 = vpop.permute.xlu0 %665
        %670 = vrot.lane.b32.xlu0 %v624, 96
        %v671 = vpop.permute.xlu0 %670
        %672 = vrot.lane.b32.xlu0 %v626, 96
        %v673 = vpop.permute.xlu0 %672
        %676 = vrot.lane.b32.xlu0 %v624, 64
        %v677 = vpop.permute.xlu0 %676
        %678 = vrot.lane.b32.xlu0 %v626, 64
        %v679 = vpop.permute.xlu0 %678
        %682 = vrot.lane.b32.xlu0 %v624, 32
        %v683 = vpop.permute.xlu0 %682
        %684 = vrot.lane.b32.xlu0 %v626, 32
        %v685 = vpop.permute.xlu0 %684
        %690 = vrot.lane.b32.xlu0 %v638, 96
        %v691 = vpop.permute.xlu0 %690
        %692 = vrot.lane.b32.xlu0 %v640, 96
        %v693 = vpop.permute.xlu0 %692
        %696 = vrot.lane.b32.xlu0 %v638, 64
        %v697 = vpop.permute.xlu0 %696
        %698 = vrot.lane.b32.xlu0 %v640, 64
        %v699 = vpop.permute.xlu0 %698
        %702 = vrot.lane.b32.xlu0 %v638, 32
        %v703 = vpop.permute.xlu0 %702
        %704 = vrot.lane.b32.xlu0 %v640, 32
        %v705 = vpop.permute.xlu0 %704
        %v708 = vpack.c.bf16 %v503, %v503
        %v709 = vpack.c.bf16 %v660, %v660
        %v710 = vpack.c.bf16 %v663, %v663
        %v711 = vpack.c.bf16 %v666, %v666
        %v712 = vpack.c.bf16 %v624, %v624
        %v713 = vpack.c.bf16 %v626, %v626
        %v714 = vpack.c.bf16 %v671, %v671
        %v715 = vpack.c.bf16 %v673, %v673
        %v716 = vpack.c.bf16 %v677, %v677
        %v717 = vpack.c.bf16 %v679, %v679
        %v718 = vpack.c.bf16 %v683, %v683
        %v719 = vpack.c.bf16 %v685, %v685
        %v722 = vunpack.c.l.b16 %v712
        %v723 = vunpack.c.l.b16 %v713
        %v724 = vpack.c.b16 %v723, %v722
        %vm725 = vcmask 261120
        %v727 = vsel %vm725, %v708, 0
        %v730 = vsel %vm725, %v724, 0
        %732 = vmatpush.bf16.xpose.msra.mxu0 0
        %733 = vmatpush.bf16.xpose.msra.mxu0 0
        %734 = vmatpush.bf16.xpose.msra.mxu0 0
        %735 = vmatpush.bf16.xpose.msra.mxu0 0
        %736 = vmatpush.bf16.xpose.msra.mxu0 0
        %737 = vmatpush.bf16.xpose.msra.mxu0 0
        %738 = vmatpush.bf16.xpose.msra.mxu0 0
        %739 = vmatpush.bf16.xpose.msra.mxu0 %v730
        %740 = vmatmul.bf16.gmra.mxu0 %v727
        %v741 = vpop.f32.mrf.mxu0
        %v742 = vadd.f32 0.0, %v741
        %v743 = vpop.f32.mrf.mxu0
        %744 = vdwg.mxu0
        %v747 = vunpack.c.l.b16 %v714
        %v748 = vunpack.c.l.b16 %v715
        %v749 = vpack.c.b16 %v748, %v747
        %v751 = vsel %vm725, %v709, 0
        %v754 = vsel %vm725, %v749, 0
        %756 = vmatpush.bf16.xpose.msra.mxu0 0
        %757 = vmatpush.bf16.xpose.msra.mxu0 0
        %758 = vmatpush.bf16.xpose.msra.mxu0 0
        %759 = vmatpush.bf16.xpose.msra.mxu0 0
        %760 = vmatpush.bf16.xpose.msra.mxu0 0
        %761 = vmatpush.bf16.xpose.msra.mxu0 0
        %762 = vmatpush.bf16.xpose.msra.mxu0 0
        %763 = vmatpush.bf16.xpose.msra.mxu0 %v754
        %764 = vmatmul.bf16.gmra.mxu0 %v751
        %v765 = vpop.f32.mrf.mxu0
        %v766 = vadd.f32 0.0, %v765
        %v767 = vpop.f32.mrf.mxu0
        %768 = vdwg.mxu0
        %v771 = vunpack.c.l.b16 %v716
        %v772 = vunpack.c.l.b16 %v717
        %v773 = vpack.c.b16 %v772, %v771
        %v775 = vsel %vm725, %v710, 0
        %v778 = vsel %vm725, %v773, 0
        %780 = vmatpush.bf16.xpose.msra.mxu0 0
        %781 = vmatpush.bf16.xpose.msra.mxu0 0
        %782 = vmatpush.bf16.xpose.msra.mxu0 0
        %783 = vmatpush.bf16.xpose.msra.mxu0 0
        %784 = vmatpush.bf16.xpose.msra.mxu0 0
        %785 = vmatpush.bf16.xpose.msra.mxu0 0
        %786 = vmatpush.bf16.xpose.msra.mxu0 0
        %787 = vmatpush.bf16.xpose.msra.mxu0 %v778
        %788 = vmatmul.bf16.gmra.mxu0 %v775
        %v789 = vpop.f32.mrf.mxu0
        %v790 = vadd.f32 0.0, %v789
        %v791 = vpop.f32.mrf.mxu0
        %792 = vdwg.mxu0
        %v795 = vunpack.c.l.b16 %v718
        %v796 = vunpack.c.l.b16 %v719
        %v797 = vpack.c.b16 %v796, %v795
        %v799 = vsel %vm725, %v711, 0
        %v802 = vsel %vm725, %v797, 0
        %804 = vmatpush.bf16.xpose.msra.mxu0 0
        %805 = vmatpush.bf16.xpose.msra.mxu0 0
        %806 = vmatpush.bf16.xpose.msra.mxu0 0
        %807 = vmatpush.bf16.xpose.msra.mxu0 0
        %808 = vmatpush.bf16.xpose.msra.mxu0 0
        %809 = vmatpush.bf16.xpose.msra.mxu0 0
        %810 = vmatpush.bf16.xpose.msra.mxu0 0
        %811 = vmatpush.bf16.xpose.msra.mxu0 %v802
        %812 = vmatmul.bf16.gmra.mxu0 %v799
        %v813 = vpop.f32.mrf.mxu0
        %v814 = vadd.f32 0.0, %v813
        %v815 = vpop.f32.mrf.mxu0
        %816 = vdwg.mxu0
        %v817 = vmul.f32 %v742, 0.17677669
        %v818 = vmul.f32 %v766, 0.17677669
        %v819 = vmul.f32 %v790, 0.17677669
        %v820 = vmul.f32 %v814, 0.17677669
        %v821 = vld [vmem:[%s357] sm:$0x1]
        %v823 = vperm.slane %v821, 0
        %v825 = vadd.f32 %v817, %v823
        %v826 = vadd.f32 %v818, %v823
        %v827 = vadd.f32 %v819, %v823
        %v828 = vadd.f32 %v820, %v823
        %vm829 = vcmask 130048
        %v830 = vsel %vm829, %v825, -inf
        %831 = vmax.xlane.f32.xlu0 %v830
        %v832 = vpop.xlane.xlu0 %831
        %v833 = vsel %vm829, %v826, -inf
        %834 = vmax.xlane.f32.xlu0 %v833
        %v835 = vpop.xlane.xlu0 %834
        %v836 = vsel %vm829, %v827, -inf
        %837 = vmax.xlane.f32.xlu0 %v836
        %v838 = vpop.xlane.xlu0 %837
        %v839 = vsel %vm829, %v828, -inf
        %840 = vmax.xlane.f32.xlu0 %v839
        %v841 = vpop.xlane.xlu0 %840
        %v842 = vsub.f32 %v825, %v832
        %v843 = vsub.f32 %v826, %v835
        %v844 = vsub.f32 %v827, %v838
        %v845 = vsub.f32 %v828, %v841
        %v846 = vmul.f32 %v842, 1.442695
        %v847 = vpow.pop %v846
        %v848 = vmul.f32 %v843, 1.442695
        %v849 = vpow.pop %v848
        %v850 = vmul.f32 %v844, 1.442695
        %v851 = vpow.pop %v850
        %v852 = vmul.f32 %v845, 1.442695
        %v853 = vpow.pop %v852
        %v854 = vsel %vm829, %v847, 0.0
        %855 = vadd.xlane.f32.xlu0 %v854
        %v856 = vpop.xlane.xlu0 %855
        %v857 = vsel %vm829, %v849, 0.0
        %858 = vadd.xlane.f32.xlu0 %v857
        %v859 = vpop.xlane.xlu0 %858
        %v860 = vsel %vm829, %v851, 0.0
        %861 = vadd.xlane.f32.xlu0 %v860
        %v862 = vpop.xlane.xlu0 %861
        %v863 = vsel %vm829, %v853, 0.0
        %864 = vadd.xlane.f32.xlu0 %v863
        %v865 = vpop.xlane.xlu0 %864
        %v866 = vrcp.pop %v856
        %v867 = vrcp.pop %v859
        %v868 = vrcp.pop %v862
        %v869 = vrcp.pop %v865
        %v870 = vmul.f32 %v847, %v866
        %v871 = vmul.f32 %v849, %v867
        %v872 = vmul.f32 %v851, %v868
        %v873 = vmul.f32 %v853, %v869
        %v874 = vpack.c.bf16 %v870, %v870
        %v875 = vpack.c.bf16 %v871, %v871
        %v876 = vpack.c.bf16 %v872, %v872
        %v877 = vpack.c.bf16 %v873, %v873
        %v878 = vpack.c.bf16 %v638, %v638
        %v879 = vpack.c.bf16 %v640, %v640
        %v880 = vpack.c.bf16 %v691, %v691
        %v881 = vpack.c.bf16 %v693, %v693
        %v882 = vpack.c.bf16 %v697, %v697
        %v883 = vpack.c.bf16 %v699, %v699
        %v884 = vpack.c.bf16 %v703, %v703
        %v885 = vpack.c.bf16 %v705, %v705
        %v888 = vunpack.c.l.b16 %v878
        %v889 = vunpack.c.l.b16 %v879
        %v890 = vpack.c.b16 %v889, %v888
        %v893 = vsel %vm829, %v874, 0
        %895 = vmatpush.bf16.msra.mxu0 0
        %896 = vmatpush.bf16.msra.mxu0 0
        %897 = vmatpush.bf16.msra.mxu0 0
        %898 = vmatpush.bf16.msra.mxu0 0
        %899 = vmatpush.bf16.msra.mxu0 0
        %900 = vmatpush.bf16.msra.mxu0 0
        %901 = vmatpush.bf16.msra.mxu0 0
        %902 = vmatpush.bf16.msra.mxu0 %v890
        %903 = vmatmul.bf16.gmra.mxu0 %v893
        %v904 = vpop.f32.mrf.mxu0
        %v905 = vadd.f32 0.0, %v904
        %v906 = vpop.f32.mrf.mxu0
        %907 = vdwg.mxu0
        %v910 = vunpack.c.l.b16 %v880
        %v911 = vunpack.c.l.b16 %v881
        %v912 = vpack.c.b16 %v911, %v910
        %v915 = vsel %vm829, %v875, 0
        %917 = vmatpush.bf16.msra.mxu0 0
        %918 = vmatpush.bf16.msra.mxu0 0
        %919 = vmatpush.bf16.msra.mxu0 0
        %920 = vmatpush.bf16.msra.mxu0 0
        %921 = vmatpush.bf16.msra.mxu0 0
        %922 = vmatpush.bf16.msra.mxu0 0
        %923 = vmatpush.bf16.msra.mxu0 0
        %924 = vmatpush.bf16.msra.mxu0 %v912
        %925 = vmatmul.bf16.gmra.mxu0 %v915
        %v926 = vpop.f32.mrf.mxu0
        %v927 = vadd.f32 0.0, %v926
        %v928 = vpop.f32.mrf.mxu0
        %929 = vdwg.mxu0
        %v932 = vunpack.c.l.b16 %v882
        %v933 = vunpack.c.l.b16 %v883
        %v934 = vpack.c.b16 %v933, %v932
        %v937 = vsel %vm829, %v876, 0
        %939 = vmatpush.bf16.msra.mxu0 0
        %940 = vmatpush.bf16.msra.mxu0 0
        %941 = vmatpush.bf16.msra.mxu0 0
        %942 = vmatpush.bf16.msra.mxu0 0
        %943 = vmatpush.bf16.msra.mxu0 0
        %944 = vmatpush.bf16.msra.mxu0 0
        %945 = vmatpush.bf16.msra.mxu0 0
        %946 = vmatpush.bf16.msra.mxu0 %v934
        %947 = vmatmul.bf16.gmra.mxu0 %v937
        %v948 = vpop.f32.mrf.mxu0
        %v949 = vadd.f32 0.0, %v948
        %v950 = vpop.f32.mrf.mxu0
        %951 = vdwg.mxu0
        %v954 = vunpack.c.l.b16 %v884
        %v955 = vunpack.c.l.b16 %v885
        %v956 = vpack.c.b16 %v955, %v954
        %v959 = vsel %vm829, %v877, 0
        %961 = vmatpush.bf16.msra.mxu0 0
        %962 = vmatpush.bf16.msra.mxu0 0
        %963 = vmatpush.bf16.msra.mxu0 0
        %964 = vmatpush.bf16.msra.mxu0 0
        %965 = vmatpush.bf16.msra.mxu0 0
        %966 = vmatpush.bf16.msra.mxu0 0
        %967 = vmatpush.bf16.msra.mxu0 0
        %968 = vmatpush.bf16.msra.mxu0 %v956
        %969 = vmatmul.bf16.gmra.mxu0 %v959
        %v970 = vpop.f32.mrf.mxu0
        %v971 = vadd.f32 0.0, %v970
        %v972 = vpop.f32.mrf.mxu0
        %973 = vdwg.mxu0
        %v974 = vpack.c.bf16 %v905, %v905
        %v975 = vpack.c.bf16 %v927, %v927
        %v976 = vpack.c.bf16 %v949, %v949
        %v977 = vpack.c.bf16 %v971, %v971
        %v982 = vunpack.c.l.b16 %v642
        %v983 = vunpack.c.l.b16 %v643
        %v984 = vunpack.c.l.b16 %v644
        %v985 = vunpack.c.l.b16 %v645
        %v986 = vpack.c.b16 %v983, %v982
        %v987 = vpack.c.b16 %v985, %v984
        %v991 = vsel %vm725, %v974, 0
        %993 = vmatpush.bf16.msra.mxu0 0
        %994 = vmatpush.bf16.msra.mxu0 0
        %995 = vmatpush.bf16.msra.mxu0 0
        %996 = vmatpush.bf16.msra.mxu0 0
        %997 = vmatpush.bf16.msra.mxu0 0
        %998 = vmatpush.bf16.msra.mxu0 0
        %999 = vmatpush.bf16.msra.mxu0 %v987
        %1000 = vmatpush.bf16.msra.mxu0 %v986
        %1001 = vmatmul.bf16.gmra.mxu0 %v991
        %v1002 = vpop.f32.mrf.mxu0
        %v1003 = vadd.f32 0.0, %v1002
        %v1004 = vpop.f32.mrf.mxu0
        %1005 = vdwg.mxu0
        %v1010 = vunpack.c.l.b16 %v646
        %v1011 = vunpack.c.l.b16 %v647
        %v1012 = vunpack.c.l.b16 %v648
        %v1013 = vunpack.c.l.b16 %v649
        %v1014 = vpack.c.b16 %v1011, %v1010
        %v1015 = vpack.c.b16 %v1013, %v1012
        %v1019 = vsel %vm725, %v975, 0
        %1021 = vmatpush.bf16.msra.mxu0 0
        %1022 = vmatpush.bf16.msra.mxu0 0
        %1023 = vmatpush.bf16.msra.mxu0 0
        %1024 = vmatpush.bf16.msra.mxu0 0
        %1025 = vmatpush.bf16.msra.mxu0 0
        %1026 = vmatpush.bf16.msra.mxu0 0
        %1027 = vmatpush.bf16.msra.mxu0 %v1015
        %1028 = vmatpush.bf16.msra.mxu0 %v1014
        %1029 = vmatmul.bf16.gmra.mxu0 %v1019
        %v1030 = vpop.f32.mrf.mxu0
        %v1031 = vadd.f32 0.0, %v1030
        %v1032 = vpop.f32.mrf.mxu0
        %1033 = vdwg.mxu0
        %v1038 = vunpack.c.l.b16 %v650
        %v1039 = vunpack.c.l.b16 %v651
        %v1040 = vunpack.c.l.b16 %v652
        %v1041 = vunpack.c.l.b16 %v653
        %v1042 = vpack.c.b16 %v1039, %v1038
        %v1043 = vpack.c.b16 %v1041, %v1040
        %v1047 = vsel %vm725, %v976, 0
        %1049 = vmatpush.bf16.msra.mxu0 0
        %1050 = vmatpush.bf16.msra.mxu0 0
        %1051 = vmatpush.bf16.msra.mxu0 0
        %1052 = vmatpush.bf16.msra.mxu0 0
        %1053 = vmatpush.bf16.msra.mxu0 0
        %1054 = vmatpush.bf16.msra.mxu0 0
        %1055 = vmatpush.bf16.msra.mxu0 %v1043
        %1056 = vmatpush.bf16.msra.mxu0 %v1042
        %1057 = vmatmul.bf16.gmra.mxu0 %v1047
        %v1058 = vpop.f32.mrf.mxu0
        %v1059 = vadd.f32 0.0, %v1058
        %v1060 = vpop.f32.mrf.mxu0
        %1061 = vdwg.mxu0
        %v1066 = vunpack.c.l.b16 %v654
        %v1067 = vunpack.c.l.b16 %v655
        %v1068 = vunpack.c.l.b16 %v656
        %v1069 = vunpack.c.l.b16 %v657
        %v1070 = vpack.c.b16 %v1067, %v1066
        %v1071 = vpack.c.b16 %v1069, %v1068
        %v1075 = vsel %vm725, %v977, 0
        %1077 = vmatpush.bf16.msra.mxu0 0
        %1078 = vmatpush.bf16.msra.mxu0 0
        %1079 = vmatpush.bf16.msra.mxu0 0
        %1080 = vmatpush.bf16.msra.mxu0 0
        %1081 = vmatpush.bf16.msra.mxu0 0
        %1082 = vmatpush.bf16.msra.mxu0 0
        %1083 = vmatpush.bf16.msra.mxu0 %v1071
        %1084 = vmatpush.bf16.msra.mxu0 %v1070
        %1085 = vmatmul.bf16.gmra.mxu0 %v1075
        %v1086 = vpop.f32.mrf.mxu0
        %v1087 = vadd.f32 0.0, %v1086
        %v1088 = vpop.f32.mrf.mxu0
        %1089 = vdwg.mxu0
        %v1090 = vadd.f32 %v1003, %v1031
        %v1091 = vadd.f32 %v1090, %v1059
        %v1092 = vadd.f32 %v1091, %v1087
        %v1093 = vld [vmem:[%s7] sm:$0x1]
        %v1095 = vperm.slane %v1093, 0
        %v1097 = vadd.f32 %v1092, %v1095
        %1098 = vst [vmem:[%s409] sm:$0xff] %v1097
        %s1099 = sand.u32 %s215, 1
        %s1100 = scalar_lea.sflag [#allocation4], %s1099
        %s1101 = sand.u32 %s215, 1
        %s1102 = smul.addr %s1101, 8
        %s1103 = scalar_lea.vmem [#allocation11], %s1102
        // Predicated region
        $region73: #{tpu_custom_call.1} parent=51 // pred_check
          %p1104 = pneg %p225
        $region74: #{tpu_custom_call.1} parent=51 // pred_check_branch
          %1106 = sbr.rel (%p1104) target = $region76
        $region75: #{tpu_custom_call.1} parent=51 // pred_region
          %1108 = vsyncadd %s1100, 0
          %s1109 = smul.addr %s29, 8
          %s1110 = scalar_lea.hbm %s8, %s1109
          %s1112 = sshll.u32 %s1103, 4
          %s1113 = int_to_ptr.vmem [resolvable:$true] %s1112
          %s1114 = sshll.u32 %s1110, 4
          %s1115 = int_to_ptr.hbm [resolvable:$true] %s1114
          %1117 = dma.vmem_to_hbm [thread:$0]  %s1113, 128, %s1115, %s1100
        $region76: #{tpu_custom_call.1} parent=51 // pred_fallthru
          _
      $region52: #{tpu_custom_call.1} parent=5 // pred_fallthru
        _
      %p1118 = scmp.le.s32.totalorder 2, %s24
      // Predicated region
      $region77: #{tpu_custom_call.1} parent=5 // pred_check
        %p1119 = pneg %p1118
      $region78: #{tpu_custom_call.1} parent=5 // pred_check_branch
        %1121 = sbr.rel (%p1119) target = $region80
      $region79: #{tpu_custom_call.1} parent=5 // pred_region
        %s1122 = ssub.s32 %s24, 2
        // Predicated region
        $region81: #{tpu_custom_call.1} parent=79 // pred_check
          %p1123 = pneg %p231
        $region82: #{tpu_custom_call.1} parent=79 // pred_check_branch
          %1125 = sbr.rel (%p1123) target = $region84
        $region83: #{tpu_custom_call.1} parent=79 // pred_region
          %s1126 = sand.u32 %s216, 1
          %s1127 = scalar_lea.sflag [#allocation4], %s1126
          %s1128 = sand.u32 %s216, 1
          %s1129 = smul.addr %s1128, 8
          %s1130 = scalar_lea.vmem [#allocation11], %s1129
          %1132 = dma.done %s1127, 128
        $region84: #{tpu_custom_call.1} parent=79 // pred_fallthru
          _
      $region80: #{tpu_custom_call.1} parent=5 // pred_fallthru
        _
    $region6: #{tpu_custom_call.1} parent=1 // loop_footer
      %s28 = sadd.s32 1, %s24
    $region7: #{tpu_custom_call.1} parent=1 // loop_footer_branch
      %23 = sbr.rel target = $region3
    $region8: #{tpu_custom_call.1} parent=1 // loop_exit
      _
    %1133 = vsyncpa [#allocation3], 1
    %s1134 = scalar_lea.sflag [#allocation3], 1
    %1135 = vsyncpa %s1134, 1
    %1136 = vsyncpa [#allocation6], 1
    %s1137 = scalar_lea.sflag [#allocation6], 1
    %1138 = vsyncpa %s1137, 1
    %1139 = vsyncpa [#allocation9], 1
    %1140 = vsyncpa [#allocation4], 1
    %s1141 = scalar_lea.sflag [#allocation4], 1
    %1142 = vsyncpa %s1141, 1

</llo_original>
